<compile_context>
chip_gen: v6e
topology: v6e:2x2x1
jax: 0.10.0
libtpu: 0.0.40
codegen_flags: <defaults>
</compile_context>

<pallas_src>
import jax
import jax.numpy as jnp
from jax.experimental import pallas as pl
from jax.experimental.pallas import tpu as pltpu

_COMPUTE_DTYPE = jnp.bfloat16  # MXU input dtype (f32 accumulation inside the dot)


def _vpl_kernel(patch_ref, w_ref, bias_ref, out_ref):
    # patch_ref: (Bt*S, K) bf16 -- row 0 of every S-row group is zeros (class slot)
    # w_ref    : (K, D)    bf16 -- grid-invariant
    # bias_ref : (Bt*S, D) f32  -- [cls+pos[0]; pos[1:]] tiled Bt times, grid-invariant
    # out_ref  : (Bt*S, D) out dtype
    y = jnp.dot(patch_ref[...], w_ref[...],
                preferred_element_type=jnp.float32)        # MXU, f32 accumulate
    out_ref[...] = (y + bias_ref[...]).astype(out_ref.dtype)


def _pick_batch_tile(B, S, K, D, in_bytes, out_bytes,
                     vmem_budget=20 * 1024 * 1024):
    """Largest batch tile whose double-buffered footprint fits the budget."""
    candidates = []
    for bt in range(1, B + 1):
        if B % bt:
            continue
        r = bt * S
        # Keep partial blocks sublane-aligned; a full-extent block is always ok.
        if bt != B and r % 8 != 0:
            continue
        candidates.append(bt)
        fp = 2 * (r * K * in_bytes          # patches block (double-buffered)
                  + K * D * in_bytes        # weight (constant index_map)
                  + r * D * 4               # f32 bias (constant index_map)
                  + r * D * out_bytes)      # output block
        if fp <= vmem_budget:
            best = bt
        else:
            break
    if 'best' in dir():
        pass
    try:
        return best
    except NameError:
        # Nothing fits the budget: fall back to the smallest aligned tile
        # (minimizes VMEM pressure; correctness is unaffected).
        return candidates[0] if candidates else B


@jax.jit
def vision_prompt_learner_forward(x, conv1_w, class_embedding,
                                  positional_embedding, ctx):
    """Replicates VisionPromptLearner.forward.

    x                    : (B, C, H, W)   NCHW
    conv1_w              : (D, C, ph, pw) OIHW, stride == kernel size, no bias
    class_embedding      : (D,)
    positional_embedding : (S, D), S = (H//ph)*(W//pw) + 1
    ctx                  : (L, n_pro, D)

    Returns (out, ctx_expanded): out (B, S, D), ctx_expanded (B, L, n_pro, D).
    """
    B, C, H, W = x.shape
    D, Cw, ph, pw = conv1_w.shape
    assert C == Cw and H % ph == 0 and W % pw == 0
    Hp, Wp = H // ph, W // pw
    P = Hp * Wp
    K = C * ph * pw
    S = P + 1
    out_dtype = x.dtype

    # --- XLA glue: patchify (stride == kernel -> non-overlapping patches) ----
    # Inner ordering (C, kh, kw) matches the OIHW conv weight flattening.
    patches = x.reshape(B, C, Hp, ph, Wp, pw)
    patches = patches.transpose(0, 2, 4, 1, 3, 5).reshape(B, P, K)
    # Prepend one zero "patch" per image: its matmul row is exactly 0, so the
    # fused bias add reproduces the class token (cls + pos[0]) in that row.
    patches_aug = jnp.concatenate(
        [jnp.zeros((B, 1, K), patches.dtype), patches], axis=1)          # (B, S, K)
    patches_flat = patches_aug.reshape(B * S, K).astype(_COMPUTE_DTYPE)  # (B*S, K)

    w_mat = conv1_w.reshape(D, K).T.astype(_COMPUTE_DTYPE)               # (K, D)

    pos_f32 = positional_embedding.astype(jnp.float32)                   # (S, D)
    bias = pos_f32.at[0].add(class_embedding.astype(jnp.float32))        # (S, D)

    Bt = _pick_batch_tile(B, S, K, D,
                          in_bytes=jnp.dtype(_COMPUTE_DTYPE).itemsize,
                          out_bytes=jnp.dtype(out_dtype).itemsize)
    R = Bt * S
    bias_tiled = jnp.tile(bias, (Bt, 1))                                 # (R, D) f32

    out_flat = pl.pallas_call(
        _vpl_kernel,
        out_shape=jax.ShapeDtypeStruct((B * S, D), out_dtype),
        grid_spec=pltpu.PrefetchScalarGridSpec(
            num_scalar_prefetch=0,
            grid=(B // Bt,),
            in_specs=[
                pl.BlockSpec((R, K), lambda i: (i, 0)),   # patch rows of this tile
                pl.BlockSpec((K, D), lambda i: (0, 0)),   # conv weight (invariant)
                pl.BlockSpec((R, D), lambda i: (0, 0)),   # bias (invariant)
            ],
            out_specs=pl.BlockSpec((R, D), lambda i: (i, 0)),
        ),
        compiler_params=pltpu.CompilerParams(
            dimension_semantics=("parallel",),
            vmem_limit_bytes=64 * 1024 * 1024),
    )(patches_flat, w_mat, bias_tiled)

    out = out_flat.reshape(B, S, D)                                      # free reshape

    # --- XLA glue: ctx.unsqueeze(0).expand(B, ...) ---------------------------
    ctx_expanded = jnp.broadcast_to(ctx[None], (B,) + ctx.shape)
    return out, ctx_expanded


if __name__ == "__main__":
    # Small shapes consistent with the module's forward.
    B, C, H, W = 2, 4, 16, 16          # input images (NCHW)
    ph = pw = 8                        # conv1 patch size (stride == kernel)
    D = 32                             # ctx_dim / visual width
    n_pro, layer_p = 4, 3              # cfg.TRAINER.META.N_PRO / LAYERS
    P = (H // ph) * (W // pw)
    S = P + 1
    K = C * ph * pw
    dtype = jnp.float32                # clip_model.dtype for this synthetic test

    key = jax.random.PRNGKey(0)
    k_x, k_w, k_cls, k_pos, k_ctx = jax.random.split(key, 5)

    x = jax.random.normal(k_x, (B, C, H, W), dtype)
    conv1_w = jax.random.normal(k_w, (D, C, ph, pw), dtype) * 0.02
    class_embedding = jax.random.normal(k_cls, (D,), dtype) * (D ** -0.5)
    positional_embedding = jax.random.normal(k_pos, (S, D), dtype) * (D ** -0.5)
    ctx = jax.random.normal(k_ctx, (layer_p, n_pro, D), dtype) * 0.02

    out, ctx_exp = vision_prompt_learner_forward(
        x, conv1_w, class_embedding, positional_embedding, ctx)
    out = jax.block_until_ready(out)
    ctx_exp = jax.block_until_ready(ctx_exp)

    assert out.shape == (B, S, D)
    assert ctx_exp.shape == (B, layer_p, n_pro, D)

    # --- Reference 1: full-f32 conv path (mirrors the PyTorch forward). ------
    conv = jax.lax.conv_general_dilated(
        x, conv1_w, window_strides=(ph, pw), padding="VALID",
        dimension_numbers=("NCHW", "OIHW", "NCHW"))           # (B, D, Hp, Wp)
    ref = conv.reshape(B, D, -1).transpose(0, 2, 1)           # (B, P, D)
    cls_tok = jnp.broadcast_to(class_embedding[None, None, :], (B, 1, D))
    ref = jnp.concatenate([cls_tok, ref], axis=1) + positional_embedding[None]

    # --- Reference 2: same bf16-matmul / f32-accumulate precision as kernel.
    patches = x.reshape(B, C, H // ph, ph, W // pw, pw)
    patches = patches.transpose(0, 2, 4, 1, 3, 5).reshape(B * P, K)
    y_bf = jnp.dot(patches.astype(jnp.bfloat16),
                   conv1_w.reshape(D, K).T.astype(jnp.bfloat16),
                   preferred_element_type=jnp.float32).reshape(B, P, D)
    ref_bf = jnp.concatenate([cls_tok, y_bf], axis=1) + positional_embedding[None]

    assert jnp.allclose(out, ref_bf, atol=1e-4, rtol=1e-4), "mismatch vs bf16 reference"
    assert jnp.allclose(out, ref, atol=3e-2, rtol=3e-2), "mismatch vs f32 conv reference"
    assert jnp.allclose(ctx_exp, jnp.broadcast_to(ctx[None], ctx_exp.shape))

    print("KERNEL_OK")
</pallas_src>

<mosaic_0001>
module attributes {stable_mosaic.version = 11 : i64} {
  func.func @_vpl_kernel(%arg0: i32, %arg1: memref<10x256xbf16, #tpu.memory_space<vmem>>, %arg2: memref<256x32xbf16, #tpu.memory_space<vmem>>, %arg3: memref<10x32xf32, #tpu.memory_space<vmem>>, %arg4: memref<10x32xf32, #tpu.memory_space<vmem>>) attributes {dimension_semantics = [#tpu.dimension_semantics<parallel>], iteration_bounds = array<i64: 1>, scalar_prefetch = 0 : i64, scratch_operands = 0 : i64, tpu.core_type = #tpu.core_type<tc>, window_params = [{transform_indices = @transform_0, window_bounds = array<i64: 10, 256>}, {pipeline_mode = #tpu.pipeline_mode<synchronous>, transform_indices = @transform_1, window_bounds = array<i64: 256, 32>}, {pipeline_mode = #tpu.pipeline_mode<synchronous>, transform_indices = @transform_2, window_bounds = array<i64: 10, 32>}, {transform_indices = @transform_3, window_bounds = array<i64: 10, 32>}]} {
    %c0 = arith.constant 0 : index
    %c0_0 = arith.constant 0 : index
    %0 = vector.load %arg1[%c0, %c0_0] : memref<10x256xbf16, #tpu.memory_space<vmem>>, vector<10x256xbf16>
    %c0_1 = arith.constant 0 : index
    %c0_2 = arith.constant 0 : index
    %1 = vector.load %arg2[%c0_1, %c0_2] : memref<256x32xbf16, #tpu.memory_space<vmem>>, vector<256x32xbf16>
    %cst = arith.constant dense<0.000000e+00> : vector<10x32xf32>
    %2 = tpu.matmul %0, %1, %cst {dimension_numbers = #tpu.dot_dimension_numbers<[1], [0], [0], [1], [0, 0, 1, 1], [], []>} : vector<10x256xbf16>, vector<256x32xbf16>, vector<10x32xf32> -> vector<10x32xf32>
    %c0_3 = arith.constant 0 : index
    %c0_4 = arith.constant 0 : index
    %3 = vector.load %arg3[%c0_3, %c0_4] : memref<10x32xf32, #tpu.memory_space<vmem>>, vector<10x32xf32>
    %4 = arith.addf %2, %3 : vector<10x32xf32>
    %c0_5 = arith.constant 0 : index
    %c0_6 = arith.constant 0 : index
    %5 = vector.load %arg4[%c0_5, %c0_6] : memref<10x32xf32, #tpu.memory_space<vmem>>, vector<10x32xf32>
    tpu.vector_store %arg4[%c0_5, %c0_6], %4 {strides = array<i32>} : memref<10x32xf32, #tpu.memory_space<vmem>>, vector<10x32xf32>,
    return
  }
  func.func @transform_0(%arg0: i32) -> (i32, i32) {
    %c0_i32 = arith.constant 0 : i32
    %c0_i32_0 = arith.constant 0 : i32
    return %arg0, %c0_i32 : i32, i32
  }
  func.func @transform_1(%arg0: i32) -> (i32, i32) {
    %c0_i32 = arith.constant 0 : i32
    %c0_i32_0 = arith.constant 0 : i32
    %c0_i32_1 = arith.constant 0 : i32
    return %c0_i32, %c0_i32_0 : i32, i32
  }
  func.func @transform_2(%arg0: i32) -> (i32, i32) {
    %c0_i32 = arith.constant 0 : i32
    %c0_i32_0 = arith.constant 0 : i32
    %c0_i32_1 = arith.constant 0 : i32
    return %c0_i32, %c0_i32_0 : i32, i32
  }
  func.func @transform_3(%arg0: i32) -> (i32, i32) {
    %c0_i32 = arith.constant 0 : i32
    %c0_i32_0 = arith.constant 0 : i32
    return %arg0, %c0_i32 : i32, i32
  }
}

</mosaic_0001>

<llo_original>
// kernel: tile.9
$region0: #{tile.9}
  %s0 = inlined_call_operand.vmem [shape: f32[2,5,32], index: 0, kind: input, shape index: {}]
  %s1 = inlined_call_operand.vmem [shape: f32[10,32], index: 1, kind: output, shape index: {}]
  %v2 = vld [vmem:[%s0] sm:$0x1f]
  %vm3 = vcmask 261120
  %4 = vst.msk [vmem:[%s1] sm:$0x1f] %vm3, %v2
  %s5 = scalar_lea.vmem %s0, 8
  %v6 = vld [vmem:[%s5] sm:$0x1f]
  %vm7 = vcmask 261120
  %s8 = scalar_lea.vmem %s1, 5
  %9 = vst.msk [vmem:[%s8] sm:$0x1f] %vm7, %v6

// kernel: vision_prompt_learner_forward.1
$region0: #{vision_prompt_learner_forward.1}
  #allocation0 [shape = 'u32[]', space=smem, size = 0x4, offset = 0x4, fixed_abs, tag = 'smem constant byte address 0x4 - core index']
  #allocation1 [shape = 'u32[144,128]{1,0:T(1,128)}', space=vmem, size = 0x12000, scoped, tag = 'internal scratch']
  %s0 = inlined_call_operand.vmem [shape: bf16[10,256], index: 0, kind: input, shape index: {}]
  %s1 = inlined_call_operand.vmem [shape: bf16[256,32], index: 1, kind: input, shape index: {}]
  %s2 = inlined_call_operand.vmem [shape: f32[10,32], index: 2, kind: input, shape index: {}]
  %s3 = inlined_call_operand.vmem [shape: f32[10,32], index: 3, kind: output, shape index: {}]
  %s4 = sld [smem:[#allocation0]]
  $region22: #{vision_prompt_learner_forward.1} parent=0
    _
  %s6 = ssub.s32 1, %s4
  %s7 = scalar_select 0, %s6, %s4
  // Predicated region
  $region2: #{vision_prompt_learner_forward.1} parent=0 // pred_check
    _
  $region3: #{vision_prompt_learner_forward.1} parent=0 // pred_check_branch
    %9 = sbr.rel (0) target = $region5
  $region4: #{vision_prompt_learner_forward.1} parent=0 // pred_region
    _
  $region5: #{vision_prompt_learner_forward.1} parent=0 // pred_fallthru
    _
  // Predicated region
  $region6: #{vision_prompt_learner_forward.1} parent=0 // pred_check
    _
  $region7: #{vision_prompt_learner_forward.1} parent=0 // pred_check_branch
    %11 = sbr.rel (0) target = $region9
  $region8: #{vision_prompt_learner_forward.1} parent=0 // pred_region
    _
  $region9: #{vision_prompt_learner_forward.1} parent=0 // pred_fallthru
    _
  // Predicated region
  $region10: #{vision_prompt_learner_forward.1} parent=0 // pred_check
    _
  $region11: #{vision_prompt_learner_forward.1} parent=0 // pred_check_branch
    %13 = sbr.rel (0) target = $region13
  $region12: #{vision_prompt_learner_forward.1} parent=0 // pred_region
    _
  $region13: #{vision_prompt_learner_forward.1} parent=0 // pred_fallthru
    _
  %v15 = vld [vmem:[%s0] sm:$0xff]
  %v16 = vld [vmem:[%s0 + $0x8] sm:$0x11]
  %v17 = vld [vmem:[%s1] sm:$0xf]
  %v18 = vld [vmem:[%s1 + $0x4] sm:$0xf]
  %v19 = vld [vmem:[%s1 + $0x8] sm:$0xf]
  %v20 = vld [vmem:[%s1 + $0xc] sm:$0xf]
  %v21 = vld [vmem:[%s1 + $0x10] sm:$0xf]
  %v22 = vld [vmem:[%s1 + $0x14] sm:$0xf]
  %v23 = vld [vmem:[%s1 + $0x18] sm:$0xf]
  %v24 = vld [vmem:[%s1 + $0x1c] sm:$0xf]
  %v25 = vld [vmem:[%s1 + $0x20] sm:$0xf]
  %v26 = vld [vmem:[%s1 + $0x24] sm:$0xf]
  %v27 = vld [vmem:[%s1 + $0x28] sm:$0xf]
  %v28 = vld [vmem:[%s1 + $0x2c] sm:$0xf]
  %v29 = vld [vmem:[%s1 + $0x30] sm:$0xf]
  %v30 = vld [vmem:[%s1 + $0x34] sm:$0xf]
  %v31 = vld [vmem:[%s1 + $0x38] sm:$0xf]
  %v32 = vld [vmem:[%s1 + $0x3c] sm:$0xf]
  %v33 = vld [vmem:[%s1 + $0x40] sm:$0xf]
  %v34 = vld [vmem:[%s1 + $0x44] sm:$0xf]
  %v35 = vld [vmem:[%s1 + $0x48] sm:$0xf]
  %v36 = vld [vmem:[%s1 + $0x4c] sm:$0xf]
  %v37 = vld [vmem:[%s1 + $0x50] sm:$0xf]
  %v38 = vld [vmem:[%s1 + $0x54] sm:$0xf]
  %v39 = vld [vmem:[%s1 + $0x58] sm:$0xf]
  %v40 = vld [vmem:[%s1 + $0x5c] sm:$0xf]
  %v41 = vld [vmem:[%s1 + $0x60] sm:$0xf]
  %v42 = vld [vmem:[%s1 + $0x64] sm:$0xf]
  %v43 = vld [vmem:[%s1 + $0x68] sm:$0xf]
  %v44 = vld [vmem:[%s1 + $0x6c] sm:$0xf]
  %v45 = vld [vmem:[%s1 + $0x70] sm:$0xf]
  %v46 = vld [vmem:[%s1 + $0x74] sm:$0xf]
  %v47 = vld [vmem:[%s1 + $0x78] sm:$0xf]
  %v48 = vld [vmem:[%s1 + $0x7c] sm:$0xf]
  %v49 = vld [vmem:[%s2] sm:$0xff]
  %v50 = vld [vmem:[%s2 + $0x8] sm:$0x3]
  %v53 = vunpack.c.l.b16 %v15
  %v54 = vunpack.c.h.b16 %v15
  %v55 = vunpack.c.l.b16 %v16
  %v56 = vunpack.c.h.b16 %v16
  %v57 = vpack.c.b16 %v55, %v53
  %v58 = vpack.c.b16 %v56, %v54
  %v93 = vunpack.c.l.b16 %v17
  %v94 = vunpack.c.l.b16 %v18
  %v95 = vunpack.c.l.b16 %v19
  %v96 = vunpack.c.l.b16 %v20
  %v97 = vunpack.c.l.b16 %v21
  %v98 = vunpack.c.l.b16 %v22
  %v99 = vunpack.c.l.b16 %v23
  %v100 = vunpack.c.l.b16 %v24
  %v101 = vunpack.c.l.b16 %v25
  %v102 = vunpack.c.l.b16 %v26
  %v103 = vunpack.c.l.b16 %v27
  %v104 = vunpack.c.l.b16 %v28
  %v105 = vunpack.c.l.b16 %v29
  %v106 = vunpack.c.l.b16 %v30
  %v107 = vunpack.c.l.b16 %v31
  %v108 = vunpack.c.l.b16 %v32
  %v109 = vunpack.c.l.b16 %v33
  %v110 = vunpack.c.l.b16 %v34
  %v111 = vunpack.c.l.b16 %v35
  %v112 = vunpack.c.l.b16 %v36
  %v113 = vunpack.c.l.b16 %v37
  %v114 = vunpack.c.l.b16 %v38
  %v115 = vunpack.c.l.b16 %v39
  %v116 = vunpack.c.l.b16 %v40
  %v117 = vunpack.c.l.b16 %v41
  %v118 = vunpack.c.l.b16 %v42
  %v119 = vunpack.c.l.b16 %v43
  %v120 = vunpack.c.l.b16 %v44
  %v121 = vunpack.c.l.b16 %v45
  %v122 = vunpack.c.l.b16 %v46
  %v123 = vunpack.c.l.b16 %v47
  %v124 = vunpack.c.l.b16 %v48
  %v125 = vpack.c.b16 %v94, %v93
  %v126 = vpack.c.b16 %v96, %v95
  %v127 = vpack.c.b16 %v98, %v97
  %v128 = vpack.c.b16 %v100, %v99
  %v129 = vpack.c.b16 %v102, %v101
  %v130 = vpack.c.b16 %v104, %v103
  %v131 = vpack.c.b16 %v106, %v105
  %v132 = vpack.c.b16 %v108, %v107
  %v133 = vpack.c.b16 %v110, %v109
  %v134 = vpack.c.b16 %v112, %v111
  %v135 = vpack.c.b16 %v114, %v113
  %v136 = vpack.c.b16 %v116, %v115
  %v137 = vpack.c.b16 %v118, %v117
  %v138 = vpack.c.b16 %v120, %v119
  %v139 = vpack.c.b16 %v122, %v121
  %v140 = vpack.c.b16 %v124, %v123
  %157 = vmatprep.subr.bf16.mxu0 0
  %158 = vmatpush1.bf16.msra.mxu0 %v132
  %159 = vmatprep.subr.bf16.mxu0 0
  %160 = vmatpush1.bf16.msra.mxu0 %v131
  %161 = vmatprep.subr.bf16.mxu0 0
  %162 = vmatpush1.bf16.msra.mxu0 %v130
  %163 = vmatprep.subr.bf16.mxu0 0
  %164 = vmatpush1.bf16.msra.mxu0 %v129
  %165 = vmatprep.subr.bf16.mxu0 0
  %166 = vmatpush1.bf16.msra.mxu0 %v128
  %167 = vmatprep.subr.bf16.mxu0 0
  %168 = vmatpush1.bf16.msra.mxu0 %v127
  %169 = vmatprep.subr.bf16.mxu0 0
  %170 = vmatpush1.bf16.msra.mxu0 %v126
  %171 = vmatprep.subr.bf16.mxu0 0
  %172 = vmatpush1.bf16.msra.mxu0 %v125
  %173 = vmatprep.subr.bf16.mxu0 0
  %174 = vmatpush2.bf16.msra.mxu0 %v140
  %175 = vmatprep.subr.bf16.mxu0 0
  %176 = vmatpush2.bf16.msra.mxu0 %v139
  %177 = vmatprep.subr.bf16.mxu0 0
  %178 = vmatpush2.bf16.msra.mxu0 %v138
  %179 = vmatprep.subr.bf16.mxu0 0
  %180 = vmatpush2.bf16.msra.mxu0 %v137
  %181 = vmatprep.subr.bf16.mxu0 0
  %182 = vmatpush2.bf16.msra.mxu0 %v136
  %183 = vmatprep.subr.bf16.mxu0 0
  %184 = vmatpush2.bf16.msra.mxu0 %v135
  %185 = vmatprep.subr.bf16.mxu0 0
  %186 = vmatpush2.bf16.msra.mxu0 %v134
  %187 = vmatprep.subr.bf16.mxu0 0
  %188 = vmatpush2.bf16.msra.mxu0 %v133
  %189 = vmatprep.mubr.bf16.mxu0 %v58
  %190 = vmatmul.mubr.bf16.gmra.mxu0 %v57
  %v191 = vpop.f32.mrf.mxu0
  %v192 = vadd.f32 %v49, %v191
  %v193 = vpop.f32.mrf.mxu0
  %v194 = vpop.f32.mrf.mxu0
  %v195 = vadd.f32 %v50, %v194
  %v196 = vpop.f32.mrf.mxu0
  %197 = vdwg.mxu0
  %vm198 = vcmask 261120
  %199 = vst.msk [vmem:[%s3] sm:$0xff] %vm198, %v192
  %vm200 = vcmask 254976
  %201 = vst.msk [vmem:[%s3 + $0x8] sm:$0x3] %vm200, %v195
  // Predicated region
  $region14: #{vision_prompt_learner_forward.1} parent=0 // pred_check
    _
  $region15: #{vision_prompt_learner_forward.1} parent=0 // pred_check_branch
    %203 = sbr.rel (0) target = $region17
  $region16: #{vision_prompt_learner_forward.1} parent=0 // pred_region
    _
  $region17: #{vision_prompt_learner_forward.1} parent=0 // pred_fallthru
    _
  // Predicated region
  $region18: #{vision_prompt_learner_forward.1} parent=0 // pred_check
    _
  $region19: #{vision_prompt_learner_forward.1} parent=0 // pred_check_branch
    %205 = sbr.rel (0) target = $region21
  $region20: #{vision_prompt_learner_forward.1} parent=0 // pred_region
    _
  $region21: #{vision_prompt_learner_forward.1} parent=0 // pred_fallthru
    _

</llo_original>
